<compile_context>
chip_gen: v7x
topology: tpu7x:2x2x1
jax: 0.10.0
libtpu: 0.0.40
codegen_flags: <defaults>
</compile_context>

<pallas_src>
import functools

import jax
import jax.numpy as jnp
from jax.experimental import pallas as pl
from jax.experimental.pallas import tpu as pltpu

_LANES = 128


def _cdiv(a, b):
    return -(-a // b)


def _num_shards():
    """2 parallel shards only on v7x (2 TensorCores/chip); 1 elsewhere."""
    try:
        dev = jax.devices()[0]
        if dev.platform == "tpu" and "v7" in dev.device_kind.lower():
            return 2
    except Exception:
        pass
    return 1


def _si_loss_kernel(pred_ref, targ_ref, out_ref, *, epsilon,
                    block_rows, num_full_blocks, rows_in_last):
    c = pl.program_id(0)                       # shard (TensorCore on v7x)
    i = pl.program_id(1)                       # sequential step within shard
    b = c * pl.num_programs(1) + i             # global block index

    @pl.when(i == 0)
    def _():
        out_ref[...] = jnp.zeros_like(out_ref)

    g = block_rows // 8

    def fold(x):
        # (block_rows, 128) -> (8, 128): pure vreg adds on the VPU, no XLU.
        return jnp.sum(x.reshape(g, 8, _LANES), axis=0)

    def accumulate(valid, abs_pt, d):
        # Full-vreg RMWs on the resident output block.
        out_ref[0, 0] += fold(valid.astype(jnp.float32))   # valid count
        out_ref[0, 1] += fold(abs_pt)                      # sum |p - t| (L1 fallback)
        out_ref[0, 2] += fold(jnp.abs(d))                  # sum |log diff|
        out_ref[0, 3] += fold(d)                           # sum log diff
        out_ref[0, 4] += fold(d * d)                       # sum log diff^2

    # ---- Fast path: interior (full) blocks, no index masking at all. ------
    # Wrapper zero-padding (p = t = 0) contributes nothing to any sum.
    @pl.when(b < num_full_blocks)
    def _():
        p = pred_ref[...].astype(jnp.float32)
        t = targ_ref[...].astype(jnp.float32)
        valid = (t > epsilon) & (p > epsilon)
        # logs ride the EUP slot; garbage (-inf/nan) on invalid lanes is
        # discarded by the single select.
        d = jnp.where(valid, jnp.log(p) - jnp.log(t), 0.0)
        accumulate(valid, jnp.abs(p - t), d)

    # ---- Boundary path: only emitted when the last block is partial. ------
    if rows_in_last > 0:
        @pl.when(b == num_full_blocks)
        def _():
            p = pred_ref[...].astype(jnp.float32)
            t = targ_ref[...].astype(jnp.float32)
            row_ids = jax.lax.broadcasted_iota(
                jnp.int32, (block_rows, _LANES), 0)
            row_mask = row_ids < rows_in_last        # static bound, no gidx
            valid = row_mask & (t > epsilon) & (p > epsilon)
            abs_pt = jnp.where(row_mask, jnp.abs(p - t), 0.0)
            d = jnp.where(valid, jnp.log(p) - jnp.log(t), 0.0)
            accumulate(valid, abs_pt, d)

    # Clamped idle shard steps (b > last real block) do nothing.


def scale_invariant_loss(pred, target, epsilon=1e-8, lamda=0.5):
    """JAX/Pallas equivalent of ScaleInvariantLoss.forward (returns f32 scalar)."""
    assert pred.shape == target.shape
    n = pred.size

    itemsize = pred.dtype.itemsize
    align = max(8, 32 // max(itemsize, 1))      # 8 f32, 16 bf16, 32 int8
    chunk = align * _LANES

    flat_p = pred.reshape(-1)
    flat_t = target.reshape(-1)

    # Zero-pad only when not tile-aligned; padded zeros are self-masking
    # (valid=False, |0-0|=0), so no in-kernel mask is needed for them.
    padded = _cdiv(n, chunk) * chunk
    if padded != n:
        flat_p = jnp.pad(flat_p, (0, padded - n))
        flat_t = jnp.pad(flat_t, (0, padded - n))

    rows = padded // _LANES
    P = flat_p.reshape(rows, _LANES)
    T = flat_t.reshape(rows, _LANES)

    num_shards = _num_shards()

    # 1 MiB per input block (2 MiB on v7x): ~2048-4096 f32 rows per step,
    # double-buffered x2 inputs -> 4-8 MiB, well inside the raised VMEM limit.
    max_block_bytes = (2 << 20) if num_shards == 2 else (1 << 20)
    max_rows = max(align, (max_block_bytes // (_LANES * itemsize)) // align * align)
    block_rows = min(max_rows, rows)            # rows, max_rows both align-multiples

    num_blocks = _cdiv(rows, block_rows)
    num_full_blocks = rows // block_rows
    rows_in_last = rows - num_full_blocks * block_rows   # 0 => no partial block
    steps_per_shard = _cdiv(num_blocks, num_shards)

    def in_index_map(c, i):
        # Shards that run out of blocks re-read the last block; the kernel's
        # pl.when gating skips their compute entirely.
        return (jnp.minimum(c * steps_per_shard + i, num_blocks - 1), 0)

    kernel = functools.partial(
        _si_loss_kernel,
        epsilon=float(epsilon),
        block_rows=block_rows,
        num_full_blocks=num_full_blocks,
        rows_in_last=rows_in_last,
    )

    out = pl.pallas_call(
        kernel,
        out_shape=jax.ShapeDtypeStruct((num_shards, 5, 8, _LANES), jnp.float32),
        grid_spec=pltpu.PrefetchScalarGridSpec(
            num_scalar_prefetch=0,
            grid=(num_shards, steps_per_shard),
            in_specs=[
                pl.BlockSpec((block_rows, _LANES), in_index_map),
                pl.BlockSpec((block_rows, _LANES), in_index_map),
            ],
            out_specs=pl.BlockSpec((1, 5, 8, _LANES), lambda c, i: (c, 0, 0, 0)),
        ),
        compiler_params=pltpu.CompilerParams(
            dimension_semantics=("parallel", "arbitrary"),
            vmem_limit_bytes=40 * 1024 * 1024,
        ),
    )(P, T)

    # Tiny glue: reduce shard slabs + sublanes + lanes -> 5 scalars.
    sums = jnp.sum(out, axis=(0, 2, 3))
    count = sums[0]
    sum_abs_pt = sums[1]
    sum_abs_d = sums[2]
    sum_d = sums[3]
    sum_d2 = sums[4]

    # F.l1_loss fallback: mean over *all* elements of |pred - target|.
    l1_fallback = sum_abs_pt / jnp.float32(n)

    safe_cnt = jnp.maximum(count, 1.0)
    mean_abs = sum_abs_d / safe_cnt                  # mean |log diff| over valid
    mean_d = sum_d / safe_cnt
    var = sum_d2 / safe_cnt - mean_d * mean_d        # biased variance (unbiased=False)
    si_loss = jnp.abs(mean_abs - lamda * jnp.sqrt(var + 1e-10))

    if lamda > 0:
        main = jnp.where(count > 1, si_loss, mean_abs)
    else:
        main = mean_abs

    # "not any(valid) or sum(valid) < 10"  <=>  count < 10
    return jnp.where(count < 10, l1_fallback, main)


def _reference(pred, target, epsilon=1e-8, lamda=0.5):
    """Pure-JAX reference mirroring the PyTorch forward (masked reductions)."""
    valid = (target > epsilon) & (pred > epsilon)
    cnt = jnp.sum(valid.astype(jnp.float32))
    l1_fb = jnp.mean(jnp.abs(pred - target))
    sp = jnp.where(valid, pred, 1.0)
    st = jnp.where(valid, target, 1.0)
    d = (jnp.log(sp) - jnp.log(st)) * valid.astype(jnp.float32)
    safe = jnp.maximum(cnt, 1.0)
    mean_abs = jnp.sum(jnp.abs(d)) / safe
    mean_d = jnp.sum(d) / safe
    var = jnp.sum(d * d) / safe - mean_d * mean_d
    si = jnp.abs(mean_abs - lamda * jnp.sqrt(var + 1e-10))
    main = jnp.where(cnt > 1, si, mean_abs) if lamda > 0 else mean_abs
    return jnp.where(cnt < 10, l1_fb, main)


if __name__ == "__main__":
    key = jax.random.PRNGKey(0)
    kp, kt, km = jax.random.split(key, 3)

    # Primary case: small NCHW depth batch with some invalid (<= eps) pixels.
    B, C, H, W = 2, 4, 16, 16
    pred = jax.random.uniform(kp, (B, C, H, W), jnp.float32, 0.1, 10.0)
    target = jax.random.uniform(kt, (B, C, H, W), jnp.float32, 0.1, 10.0)
    invalid = jax.random.bernoulli(km, 0.1, (B, C, H, W))
    target = jnp.where(invalid, 0.0, target)

    loss = scale_invariant_loss(pred, target)
    jax.block_until_ready(loss)
    ref = _reference(pred, target)
    assert jnp.allclose(loss, ref, rtol=2e-5, atol=1e-6), (loss, ref)

    # Too-few-valid-pixels fallback path (plain L1 over all elements).
    loss_fb = scale_invariant_loss(pred, jnp.zeros_like(target))
    jax.block_until_ready(loss_fb)
    ref_fb = _reference(pred, jnp.zeros_like(target))
    assert jnp.allclose(loss_fb, ref_fb, rtol=2e-5, atol=1e-6), (loss_fb, ref_fb)

    # Multi-block case exercising the masked boundary path (partial last block).
    kp2, kt2 = jax.random.split(jax.random.PRNGKey(1))
    p2 = jax.random.uniform(kp2, (1, 3, 1000, 128), jnp.float32, 0.05, 5.0)
    t2 = jax.random.uniform(kt2, (1, 3, 1000, 128), jnp.float32, 0.05, 5.0)
    loss2 = scale_invariant_loss(p2, t2)
    jax.block_until_ready(loss2)
    ref2 = _reference(p2, t2)
    assert jnp.allclose(loss2, ref2, rtol=1e-4, atol=1e-6), (loss2, ref2)

    # Ragged (non-tile-aligned) element count: wrapper zero-pad path.
    kp3, kt3 = jax.random.split(jax.random.PRNGKey(2))
    p3 = jax.random.uniform(kp3, (2, 3, 5, 7), jnp.float32, 0.1, 4.0)
    t3 = jax.random.uniform(kt3, (2, 3, 5, 7), jnp.float32, 0.1, 4.0)
    loss3 = scale_invariant_loss(p3, t3)
    jax.block_until_ready(loss3)
    ref3 = _reference(p3, t3)
    assert jnp.allclose(loss3, ref3, rtol=2e-5, atol=1e-6), (loss3, ref3)

    print("KERNEL_OK")
</pallas_src>

<mosaic_0001>
module attributes {stable_mosaic.version = 11 : i64} {
  func.func @_si_loss_kernel(%arg0: i32, %arg1: i32, %arg2: memref<16x128xf32, #tpu.memory_space<vmem>>, %arg3: memref<16x128xf32, #tpu.memory_space<vmem>>, %arg4: memref<1x5x8x128xf32, #tpu.memory_space<vmem>>) attributes {dimension_semantics = [#tpu.dimension_semantics<parallel>, #tpu.dimension_semantics<arbitrary>], iteration_bounds = array<i64: 1, 1>, scalar_prefetch = 0 : i64, scratch_operands = 0 : i64, tpu.core_type = #tpu.core_type<tc>, window_params = [{transform_indices = @transform_0, window_bounds = array<i64: 16, 128>}, {transform_indices = @transform_1, window_bounds = array<i64: 16, 128>}, {transform_indices = @transform_2, window_bounds = array<i64: 1, 5, 8, 128>}]} {
    %c1_i32 = arith.constant 1 : i32
    %0 = arith.muli %arg0, %c1_i32 : i32
    %1 = arith.addi %0, %arg1 : i32
    %c0_i32 = arith.constant 0 : i32
    %2 = arith.cmpi eq, %arg1, %c0_i32 : i32
    %3 = arith.extui %2 : i1 to i32
    %c0_i32_0 = arith.constant 0 : i32
    %4 = arith.cmpi ne, %3, %c0_i32_0 : i32
    scf.if %4 {
      %cst = arith.constant 0.000000e+00 : f32
      %8 = vector.broadcast %cst : f32 to vector<1x5x8x128xf32>
      %c0 = arith.constant 0 : index
      %c0_3 = arith.constant 0 : index
      %c0_4 = arith.constant 0 : index
      %c0_5 = arith.constant 0 : index
      %9 = vector.load %arg4[%c0, %c0_3, %c0_4, %c0_5] : memref<1x5x8x128xf32, #tpu.memory_space<vmem>>, vector<1x5x8x128xf32>
      tpu.vector_store %arg4[%c0, %c0_3, %c0_4, %c0_5], %8 {strides = array<i32>} : memref<1x5x8x128xf32, #tpu.memory_space<vmem>>, vector<1x5x8x128xf32>,
    } else {
    }
    %c1_i32_1 = arith.constant 1 : i32
    %5 = arith.cmpi slt, %1, %c1_i32_1 : i32
    %6 = arith.extui %5 : i1 to i32
    %c0_i32_2 = arith.constant 0 : i32
    %7 = arith.cmpi ne, %6, %c0_i32_2 : i32
    scf.if %7 {
      %c0 = arith.constant 0 : index
      %c0_3 = arith.constant 0 : index
      %8 = vector.load %arg2[%c0, %c0_3] : memref<16x128xf32, #tpu.memory_space<vmem>>, vector<16x128xf32>
      %c0_4 = arith.constant 0 : index
      %c0_5 = arith.constant 0 : index
      %9 = vector.load %arg3[%c0_4, %c0_5] : memref<16x128xf32, #tpu.memory_space<vmem>>, vector<16x128xf32>
      %cst = arith.constant 9.99999993E-9 : f32
      %10 = vector.broadcast %cst : f32 to vector<16x128xf32>
      %11 = arith.cmpf ogt, %9, %10 : vector<16x128xf32>
      %cst_6 = arith.constant 9.99999993E-9 : f32
      %12 = vector.broadcast %cst_6 : f32 to vector<16x128xf32>
      %13 = arith.cmpf ogt, %8, %12 : vector<16x128xf32>
      %14 = arith.andi %11, %13 : vector<16x128xi1>
      %15 = math.log %8 : vector<16x128xf32>
      %16 = math.log %9 : vector<16x128xf32>
      %17 = arith.subf %15, %16 : vector<16x128xf32>
      %cst_7 = arith.constant 0.000000e+00 : f32
      %18 = vector.broadcast %cst_7 : f32 to vector<16x128xf32>
      %19 = arith.select %14, %17, %18 : vector<16x128xi1>, vector<16x128xf32>
      %20 = arith.subf %8, %9 : vector<16x128xf32>
      %21 = math.absf %20 : vector<16x128xf32>
      %c0_8 = arith.constant 0 : index
      %c0_9 = arith.constant 0 : index
      %c0_10 = arith.constant 0 : index
      %c0_11 = arith.constant 0 : index
      %22 = vector.load %arg4[%c0_8, %c0_9, %c0_10, %c0_11] : memref<1x5x8x128xf32, #tpu.memory_space<vmem>>, vector<1x1x8x128xf32>
      %23 = vector.shape_cast %22 : vector<1x1x8x128xf32> to vector<8x128xf32>
      %24 = arith.extui %14 : vector<16x128xi1> to vector<16x128xi32>
      %25 = arith.sitofp %24 : vector<16x128xi32> to vector<16x128xf32>
      %26 = vector.shape_cast %25 : vector<16x128xf32> to vector<2x8x128xf32>
      %cst_12 = arith.constant dense<0.000000e+00> : vector<8x128xf32>
      %27 = vector.multi_reduction <add>, %26, %cst_12 [0] : vector<2x8x128xf32> to vector<8x128xf32>
      %28 = arith.addf %23, %27 : vector<8x128xf32>
      %c0_13 = arith.constant 0 : index
      %c0_14 = arith.constant 0 : index
      %c0_15 = arith.constant 0 : index
      %c0_16 = arith.constant 0 : index
      %29 = vector.load %arg4[%c0_13, %c0_14, %c0_15, %c0_16] : memref<1x5x8x128xf32, #tpu.memory_space<vmem>>, vector<1x1x8x128xf32>
      %30 = vector.shape_cast %29 : vector<1x1x8x128xf32> to vector<8x128xf32>
      %31 = vector.shape_cast %28 : vector<8x128xf32> to vector<1x1x8x128xf32>
      tpu.vector_store %arg4[%c0_13, %c0_14, %c0_15, %c0_16], %31 {strides = array<i32>} : memref<1x5x8x128xf32, #tpu.memory_space<vmem>>, vector<1x1x8x128xf32>,
      %c0_17 = arith.constant 0 : index
      %c1 = arith.constant 1 : index
      %c0_18 = arith.constant 0 : index
      %c0_19 = arith.constant 0 : index
      %32 = vector.load %arg4[%c0_17, %c1, %c0_18, %c0_19] : memref<1x5x8x128xf32, #tpu.memory_space<vmem>>, vector<1x1x8x128xf32>
      %33 = vector.shape_cast %32 : vector<1x1x8x128xf32> to vector<8x128xf32>
      %34 = vector.shape_cast %21 : vector<16x128xf32> to vector<2x8x128xf32>
      %cst_20 = arith.constant dense<0.000000e+00> : vector<8x128xf32>
      %35 = vector.multi_reduction <add>, %34, %cst_20 [0] : vector<2x8x128xf32> to vector<8x128xf32>
      %36 = arith.addf %33, %35 : vector<8x128xf32>
      %c0_21 = arith.constant 0 : index
      %c1_22 = arith.constant 1 : index
      %c0_23 = arith.constant 0 : index
      %c0_24 = arith.constant 0 : index
      %37 = vector.load %arg4[%c0_21, %c1_22, %c0_23, %c0_24] : memref<1x5x8x128xf32, #tpu.memory_space<vmem>>, vector<1x1x8x128xf32>
      %38 = vector.shape_cast %37 : vector<1x1x8x128xf32> to vector<8x128xf32>
      %39 = vector.shape_cast %36 : vector<8x128xf32> to vector<1x1x8x128xf32>
      tpu.vector_store %arg4[%c0_21, %c1_22, %c0_23, %c0_24], %39 {strides = array<i32>} : memref<1x5x8x128xf32, #tpu.memory_space<vmem>>, vector<1x1x8x128xf32>,
      %c0_25 = arith.constant 0 : index
      %c2 = arith.constant 2 : index
      %c0_26 = arith.constant 0 : index
      %c0_27 = arith.constant 0 : index
      %40 = vector.load %arg4[%c0_25, %c2, %c0_26, %c0_27] : memref<1x5x8x128xf32, #tpu.memory_space<vmem>>, vector<1x1x8x128xf32>
      %41 = vector.shape_cast %40 : vector<1x1x8x128xf32> to vector<8x128xf32>
      %42 = math.absf %19 : vector<16x128xf32>
      %43 = vector.shape_cast %42 : vector<16x128xf32> to vector<2x8x128xf32>
      %cst_28 = arith.constant dense<0.000000e+00> : vector<8x128xf32>
      %44 = vector.multi_reduction <add>, %43, %cst_28 [0] : vector<2x8x128xf32> to vector<8x128xf32>
      %45 = arith.addf %41, %44 : vector<8x128xf32>
      %c0_29 = arith.constant 0 : index
      %c2_30 = arith.constant 2 : index
      %c0_31 = arith.constant 0 : index
      %c0_32 = arith.constant 0 : index
      %46 = vector.load %arg4[%c0_29, %c2_30, %c0_31, %c0_32] : memref<1x5x8x128xf32, #tpu.memory_space<vmem>>, vector<1x1x8x128xf32>
      %47 = vector.shape_cast %46 : vector<1x1x8x128xf32> to vector<8x128xf32>
      %48 = vector.shape_cast %45 : vector<8x128xf32> to vector<1x1x8x128xf32>
      tpu.vector_store %arg4[%c0_29, %c2_30, %c0_31, %c0_32], %48 {strides = array<i32>} : memref<1x5x8x128xf32, #tpu.memory_space<vmem>>, vector<1x1x8x128xf32>,
      %c0_33 = arith.constant 0 : index
      %c3 = arith.constant 3 : index
      %c0_34 = arith.constant 0 : index
      %c0_35 = arith.constant 0 : index
      %49 = vector.load %arg4[%c0_33, %c3, %c0_34, %c0_35] : memref<1x5x8x128xf32, #tpu.memory_space<vmem>>, vector<1x1x8x128xf32>
      %50 = vector.shape_cast %49 : vector<1x1x8x128xf32> to vector<8x128xf32>
      %51 = vector.shape_cast %19 : vector<16x128xf32> to vector<2x8x128xf32>
      %cst_36 = arith.constant dense<0.000000e+00> : vector<8x128xf32>
      %52 = vector.multi_reduction <add>, %51, %cst_36 [0] : vector<2x8x128xf32> to vector<8x128xf32>
      %53 = arith.addf %50, %52 : vector<8x128xf32>
      %c0_37 = arith.constant 0 : index
      %c3_38 = arith.constant 3 : index
      %c0_39 = arith.constant 0 : index
      %c0_40 = arith.constant 0 : index
      %54 = vector.load %arg4[%c0_37, %c3_38, %c0_39, %c0_40] : memref<1x5x8x128xf32, #tpu.memory_space<vmem>>, vector<1x1x8x128xf32>
      %55 = vector.shape_cast %54 : vector<1x1x8x128xf32> to vector<8x128xf32>
      %56 = vector.shape_cast %53 : vector<8x128xf32> to vector<1x1x8x128xf32>
      tpu.vector_store %arg4[%c0_37, %c3_38, %c0_39, %c0_40], %56 {strides = array<i32>} : memref<1x5x8x128xf32, #tpu.memory_space<vmem>>, vector<1x1x8x128xf32>,
      %c0_41 = arith.constant 0 : index
      %c4 = arith.constant 4 : index
      %c0_42 = arith.constant 0 : index
      %c0_43 = arith.constant 0 : index
      %57 = vector.load %arg4[%c0_41, %c4, %c0_42, %c0_43] : memref<1x5x8x128xf32, #tpu.memory_space<vmem>>, vector<1x1x8x128xf32>
      %58 = vector.shape_cast %57 : vector<1x1x8x128xf32> to vector<8x128xf32>
      %59 = arith.mulf %19, %19 : vector<16x128xf32>
      %60 = vector.shape_cast %59 : vector<16x128xf32> to vector<2x8x128xf32>
      %cst_44 = arith.constant dense<0.000000e+00> : vector<8x128xf32>
      %61 = vector.multi_reduction <add>, %60, %cst_44 [0] : vector<2x8x128xf32> to vector<8x128xf32>
      %62 = arith.addf %58, %61 : vector<8x128xf32>
      %c0_45 = arith.constant 0 : index
      %c4_46 = arith.constant 4 : index
      %c0_47 = arith.constant 0 : index
      %c0_48 = arith.constant 0 : index
      %63 = vector.load %arg4[%c0_45, %c4_46, %c0_47, %c0_48] : memref<1x5x8x128xf32, #tpu.memory_space<vmem>>, vector<1x1x8x128xf32>
      %64 = vector.shape_cast %63 : vector<1x1x8x128xf32> to vector<8x128xf32>
      %65 = vector.shape_cast %62 : vector<8x128xf32> to vector<1x1x8x128xf32>
      tpu.vector_store %arg4[%c0_45, %c4_46, %c0_47, %c0_48], %65 {strides = array<i32>} : memref<1x5x8x128xf32, #tpu.memory_space<vmem>>, vector<1x1x8x128xf32>,
    } else {
    }
    return
  }
  func.func @transform_0(%arg0: i32, %arg1: i32) -> (i32, i32) {
    %c1_i32 = arith.constant 1 : i32
    %0 = arith.muli %arg0, %c1_i32 : i32
    %1 = arith.addi %0, %arg1 : i32
    %c0_i32 = arith.constant 0 : i32
    %2 = arith.minsi %1, %c0_i32 : i32
    %c0_i32_0 = arith.constant 0 : i32
    %c0_i32_1 = arith.constant 0 : i32
    return %2, %c0_i32_0 : i32, i32
  }
  func.func @transform_1(%arg0: i32, %arg1: i32) -> (i32, i32) {
    %c1_i32 = arith.constant 1 : i32
    %0 = arith.muli %arg0, %c1_i32 : i32
    %1 = arith.addi %0, %arg1 : i32
    %c0_i32 = arith.constant 0 : i32
    %2 = arith.minsi %1, %c0_i32 : i32
    %c0_i32_0 = arith.constant 0 : i32
    %c0_i32_1 = arith.constant 0 : i32
    return %2, %c0_i32_0 : i32, i32
  }
  func.func @transform_2(%arg0: i32, %arg1: i32) -> (i32, i32, i32, i32) {
    %c0_i32 = arith.constant 0 : i32
    %c0_i32_0 = arith.constant 0 : i32
    %c0_i32_1 = arith.constant 0 : i32
    %c0_i32_2 = arith.constant 0 : i32
    return %arg0, %c0_i32, %c0_i32_0, %c0_i32_1 : i32, i32, i32, i32
  }
}

</mosaic_0001>

<llo_original>
// kernel: tpu_custom_call.1
$region0: #{tpu_custom_call.1}
  #allocation0 [shape = 'u32[]', space=smem, size = 0x4, offset = 0x4, fixed_abs, tag = 'smem constant byte address 0x4 - core index']
  #allocation1 [shape = 'u32[144,128]{1,0:T(1,128)}', space=vmem, size = 0x12000, scoped, tag = 'internal scratch']
  %s0 = inlined_call_operand.hbm [shape: f32[16,128], index: 0, kind: input, shape index: {}]
  %s1 = inlined_call_operand.hbm [shape: f32[16,128], index: 1, kind: input, shape index: {}]
  %s2 = inlined_call_operand.hbm [shape: f32[1,5,8,128], index: 2, kind: output, shape index: {}]
  %s3 = sld [smem:[#allocation0]]
  $region34: #{tpu_custom_call.1} parent=0
    _
  %s5 = ssub.s32 1, %s3
  %s6 = scalar_select 0, %s5, %s3
  $region1: #{tpu_custom_call.1} parent=0
    #allocation2 [shape = 'u8[8192]{0}', space=vmem, size = 0x2000, scoped, tag = 'input window, operand 0, single buffered']
    #allocation3 [shape = 's32[1]{0}', space=sflag, size = 0x4, scoped, tag = 'scoped memory for tpu_custom_call.1']
    #allocation4 [shape = 's32[1]{0}', space=sflag, size = 0x4, scoped, tag = 'scoped memory for tpu_custom_call.1']
    #allocation5 [shape = 'u8[8192]{0}', space=vmem, size = 0x2000, scoped, tag = 'input window, operand 1, single buffered']
    #allocation6 [shape = 's32[1]{0}', space=sflag, size = 0x4, scoped, tag = 'scoped memory for tpu_custom_call.1']
    #allocation7 [shape = 'u8[20480]{0}', space=vmem, size = 0x5000, scoped, tag = 'output window, operand 0, single buffered']
    %7 = vsyncpa [#allocation3], 0
    %8 = vsyncpa [#allocation6], 0
    %9 = vsyncpa [#allocation4], 0
    // Predicated region
    $region2: #{tpu_custom_call.1} parent=1 // pred_check
      _
    $region3: #{tpu_custom_call.1} parent=1 // pred_check_branch
      %11 = sbr.rel (0) target = $region5
    $region4: #{tpu_custom_call.1} parent=1 // pred_region
      %s12 = sadd.s32 0, 0
      %p13 = scmp.lt.s32.totalorder %s12, 0
      %s14 = scalar_select %p13, %s12, 0
      %s15 = smul.u32 2, %s14
      %s17 = ssub.s32 256, 256
      %18 = vsyncadd [#allocation3], %s17
      %s19 = smul.addr %s15, 128
      %s20 = scalar_lea.hbm %s0, %s19
      %s21 = sshll.u32 [#allocation2], 4
      %s22 = int_to_ptr.vmem [resolvable:$true] %s21
      %27 = dma.hbm_to_vmem [thread:$0]  %s20, 256, %s22, [#allocation3], 128, 128, 8
    $region5: #{tpu_custom_call.1} parent=1 // pred_fallthru
      _
    // Predicated region
    $region6: #{tpu_custom_call.1} parent=1 // pred_check
      _
    $region7: #{tpu_custom_call.1} parent=1 // pred_check_branch
      %29 = sbr.rel (0) target = $region9
    $region8: #{tpu_custom_call.1} parent=1 // pred_region
      %s30 = sadd.s32 0, 0
      %p31 = scmp.lt.s32.totalorder %s30, 0
      %s32 = scalar_select %p31, %s30, 0
      %s33 = smul.u32 2, %s32
      %s35 = ssub.s32 256, 256
      %36 = vsyncadd [#allocation6], %s35
      %s37 = smul.addr %s33, 128
      %s38 = scalar_lea.hbm %s1, %s37
      %s39 = sshll.u32 [#allocation5], 4
      %s40 = int_to_ptr.vmem [resolvable:$true] %s39
      %45 = dma.hbm_to_vmem [thread:$0]  %s38, 256, %s40, [#allocation6], 128, 128, 8
    $region9: #{tpu_custom_call.1} parent=1 // pred_fallthru
      _
    // Predicated region
    $region10: #{tpu_custom_call.1} parent=1 // pred_check
      _
    $region11: #{tpu_custom_call.1} parent=1 // pred_check_branch
      %47 = sbr.rel (0) target = $region13
    $region12: #{tpu_custom_call.1} parent=1 // pred_region
      %48 = dma.done [#allocation3], 256
    $region13: #{tpu_custom_call.1} parent=1 // pred_fallthru
      _
    // Predicated region
    $region14: #{tpu_custom_call.1} parent=1 // pred_check
      _
    $region15: #{tpu_custom_call.1} parent=1 // pred_check_branch
      %50 = sbr.rel (0) target = $region17
    $region16: #{tpu_custom_call.1} parent=1 // pred_region
      %51 = dma.done [#allocation6], 256
    $region17: #{tpu_custom_call.1} parent=1 // pred_fallthru
      _
    %s52 = sadd.s32 0, 0
    %p53 = scmp.lt.s32.totalorder %s52, 0
    %s54 = scalar_select %p53, %s52, 0
    %s55 = smul.u32 2, %s54
    %s56 = sadd.s32 0, 0
    %p57 = scmp.lt.s32.totalorder %s56, 0
    %s58 = scalar_select %p57, %s56, 0
    %s59 = smul.u32 2, %s58
    %s60 = sadd.s32 0, 0
    %p61 = scmp.eq.s32.totalorder 0, 0
    // Predicated region
    $region18: #{tpu_custom_call.1} parent=1 // pred_check
      %p62 = pneg %p61
    $region19: #{tpu_custom_call.1} parent=1 // pred_check_branch
      %64 = sbr.rel (%p62) target = $region21
    $region20: #{tpu_custom_call.1} parent=1 // pred_region
      %65 = vst [vmem:[#allocation7] sm:$0xff] 0.0
      %66 = vst [vmem:[#allocation7 + $0x8] sm:$0xff] 0.0
      %67 = vst [vmem:[#allocation7 + $0x10] sm:$0xff] 0.0
      %68 = vst [vmem:[#allocation7 + $0x18] sm:$0xff] 0.0
      %69 = vst [vmem:[#allocation7 + $0x20] sm:$0xff] 0.0
    $region21: #{tpu_custom_call.1} parent=1 // pred_fallthru
      _
    %p70 = scmp.lt.s32.totalorder %s60, 1
    // Predicated region
    $region22: #{tpu_custom_call.1} parent=1 // pred_check
      %p71 = pneg %p70
    $region23: #{tpu_custom_call.1} parent=1 // pred_check_branch
      %73 = sbr.rel (%p71) target = $region25
    $region24: #{tpu_custom_call.1} parent=1 // pred_region
      %v74 = vld [vmem:[#allocation2] sm:$0xff]
      %v75 = vld [vmem:[#allocation2 + $0x8] sm:$0xff]
      %v76 = vld [vmem:[#allocation5] sm:$0xff]
      %v77 = vld [vmem:[#allocation5 + $0x8] sm:$0xff]
      %vm78 = vcmp.gt.f32.partialorder %v76, 1e-08
      %vm79 = vcmp.gt.f32.partialorder %v77, 1e-08
      %vm80 = vcmp.gt.f32.partialorder %v74, 1e-08
      %vm81 = vcmp.gt.f32.partialorder %v75, 1e-08
      %vm82 = vmand %vm78, %vm80
      %vm83 = vmand %vm79, %vm81
      %v84 = vlog2.pop %v74
      %v85 = vmul.f32 %v84, 0.6931472
      %v86 = vlog2.pop %v75
      %v87 = vmul.f32 %v86, 0.6931472
      %v88 = vlog2.pop %v76
      %v89 = vmul.f32 %v88, 0.6931472
      %v90 = vlog2.pop %v77
      %v91 = vmul.f32 %v90, 0.6931472
      %v92 = vsub.f32 %v85, %v89
      %v93 = vsub.f32 %v87, %v91
      %v94 = vsel %vm82, %v92, 0.0
      %v95 = vsel %vm83, %v93, 0.0
      %v96 = vsub.f32 %v74, %v76
      %v97 = vsub.f32 %v75, %v77
      %v98 = vand.u32 2147483647, %v96
      %v99 = vand.u32 2147483647, %v97
      %v100 = vld [vmem:[#allocation7] sm:$0xff]
      %v101 = vsel %vm82, 1, 0
      %v102 = vsel %vm83, 1, 0
      %v103 = vcvt.s32.f32 %v101
      %v104 = vcvt.s32.f32 %v102
      %v105 = vadd.f32 %v103, %v104
      %v106 = vadd.f32 %v100, %v105
      %107 = vst [vmem:[#allocation7] sm:$0xff] %v106
      %s108 = scalar_lea.vmem [#allocation7], 8
      %v109 = vld [vmem:[%s108] sm:$0xff]
      %v110 = vadd.f32 %v98, %v99
      %v111 = vadd.f32 %v109, %v110
      %112 = vst [vmem:[%s108] sm:$0xff] %v111
      %s113 = scalar_lea.vmem [#allocation7], 16
      %v114 = vld [vmem:[%s113] sm:$0xff]
      %v115 = vand.u32 2147483647, %v94
      %v116 = vand.u32 2147483647, %v95
      %v117 = vadd.f32 %v115, %v116
      %v118 = vadd.f32 %v114, %v117
      %119 = vst [vmem:[%s113] sm:$0xff] %v118
      %s120 = scalar_lea.vmem [#allocation7], 24
      %v121 = vld [vmem:[%s120] sm:$0xff]
      %v122 = vadd.f32 %v94, %v95
      %v123 = vadd.f32 %v121, %v122
      %124 = vst [vmem:[%s120] sm:$0xff] %v123
      %s125 = scalar_lea.vmem [#allocation7], 32
      %v126 = vld [vmem:[%s125] sm:$0xff]
      %v127 = vmul.f32 %v94, %v94
      %v128 = vmul.f32 %v95, %v95
      %v129 = vadd.f32 %v127, %v128
      %v130 = vadd.f32 %v126, %v129
      %131 = vst [vmem:[%s125] sm:$0xff] %v130
    $region25: #{tpu_custom_call.1} parent=1 // pred_fallthru
      _
    // Predicated region
    $region26: #{tpu_custom_call.1} parent=1 // pred_check
      _
    $region27: #{tpu_custom_call.1} parent=1 // pred_check_branch
      %133 = sbr.rel (0) target = $region29
    $region28: #{tpu_custom_call.1} parent=1 // pred_region
      %s135 = ssub.s32 640, 640
      %136 = vsyncadd [#allocation4], %s135
      %s137 = sshll.u32 [#allocation7], 4
      %s138 = int_to_ptr.vmem [resolvable:$true] %s137
      %143 = dma.vmem_to_hbm [thread:$0]  %s138, 640, %s2, [#allocation4], 128, 128, 8
    $region29: #{tpu_custom_call.1} parent=1 // pred_fallthru
      _
    // Predicated region
    $region30: #{tpu_custom_call.1} parent=1 // pred_check
      _
    $region31: #{tpu_custom_call.1} parent=1 // pred_check_branch
      %145 = sbr.rel (0) target = $region33
    $region32: #{tpu_custom_call.1} parent=1 // pred_region
      %146 = dma.done [#allocation4], 640
    $region33: #{tpu_custom_call.1} parent=1 // pred_fallthru
      _
    %147 = vsyncpa [#allocation3], 1
    %148 = vsyncpa [#allocation6], 1
    %149 = vsyncpa [#allocation4], 1

</llo_original>
